<compile_context>
chip_gen: v6e
topology: v6e:2x2x1
jax: 0.10.0
libtpu: 0.0.40
codegen_flags: <defaults>
</compile_context>

<pallas_src>
import jax
import jax.numpy as jnp
from jax.experimental import pallas as pl
from jax.experimental.pallas import tpu as pltpu

BN_EPS = 1e-5


def _round_up(x, m):
    return (x + m - 1) // m * m


def _vmem_limit_bytes(resident):
    """Cap the requested scoped VMEM at ~85% of physical capacity (v7x: 64 MiB)."""
    try:
        phys = pltpu.get_tpu_info().vmem_capacity_bytes
    except Exception:
        phys = 64 << 20  # conservative default (v7x per-TC size)
    cap = int(phys * 0.85)
    return int(min(max(resident * 5 // 4, 32 << 20), cap))


def mlp_kernel(x_ref, w1_ref, b1_ref, w2_ref, b2_ref, out_ref, h_ref):
    # Embedding layer (Linear with BN pre-folded, ReLU).  Dropout = identity (eval).
    # h is computed once per batch tile (first N step) and cached in VMEM scratch.
    @pl.when(pl.program_id(1) == 0)
    def _():
        h = jnp.dot(x_ref[...], w1_ref[...], preferred_element_type=jnp.float32)
        h_ref[...] = jnp.maximum(h + b1_ref[...], 0.0).astype(h_ref.dtype)

    # Regression layer: Linear on the current out-column tile (f32 accumulation).
    out = jnp.dot(h_ref[...], w2_ref[...], preferred_element_type=jnp.float32)
    out_ref[...] = (out + b2_ref[...]).astype(out_ref.dtype)


def fold_and_pack_params(params, *, num_nodes, output_dim):
    """One-time host-side prep: fold BN (running stats) + b1 into Linear1 (exact in
    eval mode), cast MXU operands to bf16, and pad out_cols only when worthwhile."""
    hidden_dim = params["w1"].shape[1]
    out_cols = num_nodes * output_dim

    scale = params["gamma"] * jax.lax.rsqrt(params["var"] + BN_EPS)       # (1, hidden)
    w1f = (params["w1"] * scale).astype(jnp.bfloat16)                     # column scale
    b1f = ((params["b1"] - params["mean"]) * scale + params["beta"]).astype(jnp.float32)

    # Pad out_cols to a 128 multiple only if it inflates the output by <= 2x
    # (lane-dense stores); otherwise keep it unpadded (tiny masked stores win).
    np128 = _round_up(out_cols, 128)
    Np = np128 if np128 <= 2 * out_cols else out_cols

    w2 = params["w2"].astype(jnp.bfloat16)
    b2 = params["b2"].astype(jnp.float32)
    if Np != out_cols:
        w2 = jnp.zeros((hidden_dim, Np), jnp.bfloat16).at[:, :out_cols].set(w2)
        b2 = jnp.zeros((1, Np), jnp.float32).at[:, :out_cols].set(b2)

    return {"w1": w1f, "b1": b1f, "w2": w2, "b2": b2, "out_cols": out_cols}


def mlp_net(x, packed, *, num_nodes, output_dim, tile_b=256, tile_n=1024,
            out_dtype=jnp.float32):
    B, input_dim = x.shape
    H = packed["w1"].shape[1]
    Np = packed["w2"].shape[1]
    out_cols = packed["out_cols"]

    # ---- batch tile: fill the MXU height (>=128) when the batch allows it, but keep
    #      >= ~4 batch grid steps on large batches for megacore sharding / pipelining.
    Bp8 = _round_up(B, 8)
    tm = min(_round_up(max(int(tile_b), 8), 8), Bp8)
    if Bp8 >= 128:
        tm = _round_up(max(tm, 128), 128)
        if Bp8 >= 256:
            tm = min(tm, max(128, (Bp8 // 4) // 128 * 128))
    Bp = _round_up(B, tm)

    # ---- N tile over out_cols: bounds resident W2 bytes (critical for v7x 64 MiB).
    if Np % 128 == 0 and Np > tile_n:
        tn = next((c for c in (1024, 512, 256, 128) if c <= tile_n and Np % c == 0), Np)
    else:
        tn = Np
    n_steps = Np // tn
    grid = (Bp // tm, n_steps)

    # ---- inputs (only the activation needs per-call handling; weights are prepacked)
    xb = x.astype(jnp.bfloat16)
    if Bp != B:
        xb = jnp.zeros((Bp, input_dim), jnp.bfloat16).at[:B].set(xb)

    def _call(single_buffer_weights):
        def const_spec(shape):
            if single_buffer_weights:
                return pl.BlockSpec(shape, lambda i, j: (0, 0),
                                    pipeline_mode=pl.Buffered(1))
            return pl.BlockSpec(shape, lambda i, j: (0, 0))

        if n_steps == 1 and single_buffer_weights:
            # W2/b2 are grid-invariant too -> single-buffer them as well.
            w2_spec = pl.BlockSpec((H, tn), lambda i, j: (0, j),
                                   pipeline_mode=pl.Buffered(1))
            b2_spec = pl.BlockSpec((1, tn), lambda i, j: (0, j),
                                   pipeline_mode=pl.Buffered(1))
            w2_bufs = 1
        else:
            w2_spec = pl.BlockSpec((H, tn), lambda i, j: (0, j))
            b2_spec = pl.BlockSpec((1, tn), lambda i, j: (0, j))
            w2_bufs = 2

        w1_bufs = 1 if single_buffer_weights else 2
        out_bytes = jnp.dtype(out_dtype).itemsize
        # VMEM budget matching the actual buffer counts (+ f32 intermediates).
        resident = (2 * tm * input_dim * 2                 # x tile (bf16, double-buf)
                    + w1_bufs * (input_dim * H * 2 + H * 4)  # W1' bf16 + b1' f32
                    + w2_bufs * (H * tn * 2 + tn * 4)        # W2 tile bf16 + b2 f32
                    + 2 * tm * tn * out_bytes                # out tile (double-buf)
                    + tm * H * 2                             # h scratch (bf16)
                    + tm * H * 4 + tm * tn * 4)              # f32 matmul intermediates
        vmem_limit = _vmem_limit_bytes(resident)

        return pl.pallas_call(
            mlp_kernel,
            out_shape=jax.ShapeDtypeStruct((Bp, Np), out_dtype),
            grid=grid,
            in_specs=[
                pl.BlockSpec((tm, input_dim), lambda i, j: (i, 0)),
                const_spec((input_dim, H)),
                const_spec((1, H)),
                w2_spec,
                b2_spec,
            ],
            out_specs=pl.BlockSpec((tm, tn), lambda i, j: (i, j)),
            scratch_shapes=[pltpu.VMEM((tm, H), jnp.bfloat16)],
            compiler_params=pltpu.CompilerParams(
                dimension_semantics=("parallel", "arbitrary"),
                vmem_limit_bytes=vmem_limit),
        )(xb, packed["w1"], packed["b1"], packed["w2"], packed["b2"])

    try:
        out_padded = _call(True)
    except Exception:
        # TODO(synk): pl.Buffered(1) single-buffering rejected on this jax version;
        # fall back to default double-buffered weights (correct, just more VMEM).
        out_padded = _call(False)

    return out_padded[:B, :out_cols].reshape(B, num_nodes, output_dim)


def init_params(key, input_dim, hidden_dim, output_dim, num_nodes):
    """Deterministic init mimicking PyTorch defaults (Linear: U(-1/sqrt(fan_in), ...))."""
    k1, k2, k3, k4 = jax.random.split(key, 4)
    out_cols = num_nodes * output_dim
    lim1 = 1.0 / jnp.sqrt(input_dim)
    lim2 = 1.0 / jnp.sqrt(hidden_dim)
    return {
        # stored as (in, out) so the kernel can do x @ W directly
        "w1": jax.random.uniform(k1, (input_dim, hidden_dim), jnp.float32, -lim1, lim1),
        "b1": jax.random.uniform(k2, (1, hidden_dim), jnp.float32, -lim1, lim1),
        # BatchNorm1d parameters / running stats
        "gamma": jnp.ones((1, hidden_dim), jnp.float32),
        "beta": jnp.zeros((1, hidden_dim), jnp.float32),
        "mean": jnp.zeros((1, hidden_dim), jnp.float32),
        "var": jnp.ones((1, hidden_dim), jnp.float32),
        "w2": jax.random.uniform(k3, (hidden_dim, out_cols), jnp.float32, -lim2, lim2),
        "b2": jax.random.uniform(k4, (1, out_cols), jnp.float32, -lim2, lim2),
    }


def mlp_ref(x, p, num_nodes, output_dim):
    """Pure-JAX f32 reference (eval-mode PyTorch semantics)."""
    h = x @ p["w1"] + p["b1"]
    h = (h - p["mean"]) * jax.lax.rsqrt(p["var"] + BN_EPS) * p["gamma"] + p["beta"]
    h = jnp.maximum(h, 0.0)
    out = h @ p["w2"] + p["b2"]
    return out.reshape(-1, num_nodes, output_dim)


if __name__ == "__main__":
    B, input_dim, hidden_dim, output_dim, num_nodes = 64, 16, 32, 2, 4

    key = jax.random.PRNGKey(0)
    kx, kp, km, kv, kg, kb = jax.random.split(key, 6)
    x = jax.random.normal(kx, (B, input_dim), jnp.float32)
    params = init_params(kp, input_dim, hidden_dim, output_dim, num_nodes)
    # Non-trivial BN running stats / affine so the host-side BN fold is actually exercised.
    params["mean"] = 0.1 * jax.random.normal(km, (1, hidden_dim), jnp.float32)
    params["var"] = jax.random.uniform(kv, (1, hidden_dim), jnp.float32, 0.5, 1.5)
    params["gamma"] = jax.random.uniform(kg, (1, hidden_dim), jnp.float32, 0.5, 1.5)
    params["beta"] = 0.1 * jax.random.normal(kb, (1, hidden_dim), jnp.float32)

    # One-time weight fold/pack (hoisted out of the per-call path), then forward.
    packed = fold_and_pack_params(params, num_nodes=num_nodes, output_dim=output_dim)
    out = mlp_net(x, packed, num_nodes=num_nodes, output_dim=output_dim)
    out = jax.block_until_ready(out)

    ref = mlp_ref(x, params, num_nodes, output_dim)
    assert out.shape == (B, num_nodes, output_dim), out.shape
    # bf16 matmul operands (f32 accumulation) -> looser tolerance than pure f32.
    assert jnp.allclose(out, ref, atol=5e-2, rtol=5e-2), "mismatch vs JAX reference"

    print("KERNEL_OK")
</pallas_src>

<mosaic_0001>
module attributes {stable_mosaic.version = 11 : i64} {
  func.func @mlp_kernel(%arg0: i32, %arg1: i32, %arg2: memref<64x16xbf16, #tpu.memory_space<vmem>>, %arg3: memref<16x32xbf16, #tpu.memory_space<vmem>>, %arg4: memref<1x32xf32, #tpu.memory_space<vmem>>, %arg5: memref<32x8xbf16, #tpu.memory_space<vmem>>, %arg6: memref<1x8xf32, #tpu.memory_space<vmem>>, %arg7: memref<64x8xf32, #tpu.memory_space<vmem>>, %arg8: memref<64x32xbf16, #tpu.memory_space<vmem>>) attributes {dimension_semantics = [#tpu.dimension_semantics<parallel>, #tpu.dimension_semantics<arbitrary>], iteration_bounds = array<i64: 1, 1>, scalar_prefetch = 0 : i64, scratch_operands = 1 : i64, tpu.core_type = #tpu.core_type<tc>, window_params = [{transform_indices = @transform_0, window_bounds = array<i64: 64, 16>}, {pipeline_mode = #tpu.pipeline_mode<synchronous>, transform_indices = @transform_1, window_bounds = array<i64: 16, 32>}, {pipeline_mode = #tpu.pipeline_mode<synchronous>, transform_indices = @transform_2, window_bounds = array<i64: 1, 32>}, {pipeline_mode = #tpu.pipeline_mode<synchronous>, transform_indices = @transform_3, window_bounds = array<i64: 32, 8>}, {pipeline_mode = #tpu.pipeline_mode<synchronous>, transform_indices = @transform_4, window_bounds = array<i64: 1, 8>}, {transform_indices = @transform_5, window_bounds = array<i64: 64, 8>}]} {
    %c0_i32 = arith.constant 0 : i32
    %0 = arith.cmpi eq, %arg1, %c0_i32 : i32
    %1 = arith.extui %0 : i1 to i32
    %c0_i32_0 = arith.constant 0 : i32
    %2 = arith.cmpi ne, %1, %c0_i32_0 : i32
    scf.if %2 {
      %c0_8 = arith.constant 0 : index
      %c0_9 = arith.constant 0 : index
      %10 = vector.load %arg2[%c0_8, %c0_9] : memref<64x16xbf16, #tpu.memory_space<vmem>>, vector<64x16xbf16>
      %c0_10 = arith.constant 0 : index
      %c0_11 = arith.constant 0 : index
      %11 = vector.load %arg3[%c0_10, %c0_11] : memref<16x32xbf16, #tpu.memory_space<vmem>>, vector<16x32xbf16>
      %cst_12 = arith.constant dense<0.000000e+00> : vector<64x32xf32>
      %12 = tpu.matmul %10, %11, %cst_12 {dimension_numbers = #tpu.dot_dimension_numbers<[1], [0], [0], [1], [0, 0, 1, 1], [], []>} : vector<64x16xbf16>, vector<16x32xbf16>, vector<64x32xf32> -> vector<64x32xf32>
      %c0_13 = arith.constant 0 : index
      %c0_14 = arith.constant 0 : index
      %13 = vector.load %arg4[%c0_13, %c0_14] : memref<1x32xf32, #tpu.memory_space<vmem>>, vector<1x32xf32>
      %14 = vector.broadcast %13 : vector<1x32xf32> to vector<64x32xf32>
      %15 = arith.addf %12, %14 : vector<64x32xf32>
      %cst_15 = arith.constant 0.000000e+00 : f32
      %16 = vector.broadcast %cst_15 : f32 to vector<64x32xf32>
      %17 = arith.maximumf %15, %16 : vector<64x32xf32>
      %18 = arith.truncf %17 : vector<64x32xf32> to vector<64x32xbf16>
      %c0_16 = arith.constant 0 : index
      %c0_17 = arith.constant 0 : index
      %19 = vector.load %arg8[%c0_16, %c0_17] : memref<64x32xbf16, #tpu.memory_space<vmem>>, vector<64x32xbf16>
      tpu.vector_store %arg8[%c0_16, %c0_17], %18 {strides = array<i32>} : memref<64x32xbf16, #tpu.memory_space<vmem>>, vector<64x32xbf16>,
    } else {
    }
    %c0 = arith.constant 0 : index
    %c0_1 = arith.constant 0 : index
    %3 = vector.load %arg8[%c0, %c0_1] : memref<64x32xbf16, #tpu.memory_space<vmem>>, vector<64x32xbf16>
    %c0_2 = arith.constant 0 : index
    %c0_3 = arith.constant 0 : index
    %4 = vector.load %arg5[%c0_2, %c0_3] : memref<32x8xbf16, #tpu.memory_space<vmem>>, vector<32x8xbf16>
    %cst = arith.constant dense<0.000000e+00> : vector<64x8xf32>
    %5 = tpu.matmul %3, %4, %cst {dimension_numbers = #tpu.dot_dimension_numbers<[1], [0], [0], [1], [0, 0, 1, 1], [], []>} : vector<64x32xbf16>, vector<32x8xbf16>, vector<64x8xf32> -> vector<64x8xf32>
    %c0_4 = arith.constant 0 : index
    %c0_5 = arith.constant 0 : index
    %6 = vector.load %arg6[%c0_4, %c0_5] : memref<1x8xf32, #tpu.memory_space<vmem>>, vector<1x8xf32>
    %7 = vector.broadcast %6 : vector<1x8xf32> to vector<64x8xf32>
    %8 = arith.addf %5, %7 : vector<64x8xf32>
    %c0_6 = arith.constant 0 : index
    %c0_7 = arith.constant 0 : index
    %9 = vector.load %arg7[%c0_6, %c0_7] : memref<64x8xf32, #tpu.memory_space<vmem>>, vector<64x8xf32>
    tpu.vector_store %arg7[%c0_6, %c0_7], %8 {strides = array<i32>} : memref<64x8xf32, #tpu.memory_space<vmem>>, vector<64x8xf32>,
    return
  }
  func.func @transform_0(%arg0: i32, %arg1: i32) -> (i32, i32) {
    %c0_i32 = arith.constant 0 : i32
    %c0_i32_0 = arith.constant 0 : i32
    return %arg0, %c0_i32 : i32, i32
  }
  func.func @transform_1(%arg0: i32, %arg1: i32) -> (i32, i32) {
    %c0_i32 = arith.constant 0 : i32
    %c0_i32_0 = arith.constant 0 : i32
    %c0_i32_1 = arith.constant 0 : i32
    return %c0_i32, %c0_i32_0 : i32, i32
  }
  func.func @transform_2(%arg0: i32, %arg1: i32) -> (i32, i32) {
    %c0_i32 = arith.constant 0 : i32
    %c0_i32_0 = arith.constant 0 : i32
    %c0_i32_1 = arith.constant 0 : i32
    return %c0_i32, %c0_i32_0 : i32, i32
  }
  func.func @transform_3(%arg0: i32, %arg1: i32) -> (i32, i32) {
    %c0_i32 = arith.constant 0 : i32
    %c0_i32_0 = arith.constant 0 : i32
    return %c0_i32, %arg1 : i32, i32
  }
  func.func @transform_4(%arg0: i32, %arg1: i32) -> (i32, i32) {
    %c0_i32 = arith.constant 0 : i32
    %c0_i32_0 = arith.constant 0 : i32
    return %c0_i32, %arg1 : i32, i32
  }
  func.func @transform_5(%arg0: i32, %arg1: i32) -> (i32, i32) {
    %c0_i32 = arith.constant 0 : i32
    return %arg0, %arg1 : i32, i32
  }
}

module attributes {stable_mosaic.version = 11 : i64} {
  func.func @mlp_kernel(%arg0: i32, %arg1: i32, %arg2: memref<64x16xbf16, #tpu.memory_space<vmem>>, %arg3: memref<16x32xbf16, #tpu.memory_space<vmem>>, %arg4: memref<1x32xf32, #tpu.memory_space<vmem>>, %arg5: memref<32x8xbf16, #tpu.memory_space<vmem>>, %arg6: memref<1x8xf32, #tpu.memory_space<vmem>>, %arg7: memref<64x8xf32, #tpu.memory_space<vmem>>, %arg8: memref<64x32xbf16, #tpu.memory_space<vmem>>) attributes {dimension_semantics = [#tpu.dimension_semantics<parallel>, #tpu.dimension_semantics<arbitrary>], iteration_bounds = array<i64: 1, 1>, scalar_prefetch = 0 : i64, scratch_operands = 1 : i64, tpu.core_type = #tpu.core_type<tc>, window_params = [{transform_indices = @transform_0, window_bounds = array<i64: 64, 16>}, {pipeline_mode = #tpu.pipeline_mode<synchronous>, transform_indices = @transform_1, window_bounds = array<i64: 16, 32>}, {pipeline_mode = #tpu.pipeline_mode<synchronous>, transform_indices = @transform_2, window_bounds = array<i64: 1, 32>}, {transform_indices = @transform_3, window_bounds = array<i64: 32, 8>}, {transform_indices = @transform_4, window_bounds = array<i64: 1, 8>}, {transform_indices = @transform_5, window_bounds = array<i64: 64, 8>}]} {
    %c0_i32 = arith.constant 0 : i32
    %0 = arith.cmpi eq, %arg1, %c0_i32 : i32
    %1 = arith.extui %0 : i1 to i32
    %c0_i32_0 = arith.constant 0 : i32
    %2 = arith.cmpi ne, %1, %c0_i32_0 : i32
    scf.if %2 {
      %c0_8 = arith.constant 0 : index
      %c0_9 = arith.constant 0 : index
      %10 = vector.load %arg2[%c0_8, %c0_9] : memref<64x16xbf16, #tpu.memory_space<vmem>>, vector<64x16xbf16>
      %c0_10 = arith.constant 0 : index
      %c0_11 = arith.constant 0 : index
      %11 = vector.load %arg3[%c0_10, %c0_11] : memref<16x32xbf16, #tpu.memory_space<vmem>>, vector<16x32xbf16>
      %cst_12 = arith.constant dense<0.000000e+00> : vector<64x32xf32>
      %12 = tpu.matmul %10, %11, %cst_12 {dimension_numbers = #tpu.dot_dimension_numbers<[1], [0], [0], [1], [0, 0, 1, 1], [], []>} : vector<64x16xbf16>, vector<16x32xbf16>, vector<64x32xf32> -> vector<64x32xf32>
      %c0_13 = arith.constant 0 : index
      %c0_14 = arith.constant 0 : index
      %13 = vector.load %arg4[%c0_13, %c0_14] : memref<1x32xf32, #tpu.memory_space<vmem>>, vector<1x32xf32>
      %14 = vector.broadcast %13 : vector<1x32xf32> to vector<64x32xf32>
      %15 = arith.addf %12, %14 : vector<64x32xf32>
      %cst_15 = arith.constant 0.000000e+00 : f32
      %16 = vector.broadcast %cst_15 : f32 to vector<64x32xf32>
      %17 = arith.maximumf %15, %16 : vector<64x32xf32>
      %18 = arith.truncf %17 : vector<64x32xf32> to vector<64x32xbf16>
      %c0_16 = arith.constant 0 : index
      %c0_17 = arith.constant 0 : index
      %19 = vector.load %arg8[%c0_16, %c0_17] : memref<64x32xbf16, #tpu.memory_space<vmem>>, vector<64x32xbf16>
      tpu.vector_store %arg8[%c0_16, %c0_17], %18 {strides = array<i32>} : memref<64x32xbf16, #tpu.memory_space<vmem>>, vector<64x32xbf16>,
    } else {
    }
    %c0 = arith.constant 0 : index
    %c0_1 = arith.constant 0 : index
    %3 = vector.load %arg8[%c0, %c0_1] : memref<64x32xbf16, #tpu.memory_space<vmem>>, vector<64x32xbf16>
    %c0_2 = arith.constant 0 : index
    %c0_3 = arith.constant 0 : index
    %4 = vector.load %arg5[%c0_2, %c0_3] : memref<32x8xbf16, #tpu.memory_space<vmem>>, vector<32x8xbf16>
    %cst = arith.constant dense<0.000000e+00> : vector<64x8xf32>
    %5 = tpu.matmul %3, %4, %cst {dimension_numbers = #tpu.dot_dimension_numbers<[1], [0], [0], [1], [0, 0, 1, 1], [], []>} : vector<64x32xbf16>, vector<32x8xbf16>, vector<64x8xf32> -> vector<64x8xf32>
    %c0_4 = arith.constant 0 : index
    %c0_5 = arith.constant 0 : index
    %6 = vector.load %arg6[%c0_4, %c0_5] : memref<1x8xf32, #tpu.memory_space<vmem>>, vector<1x8xf32>
    %7 = vector.broadcast %6 : vector<1x8xf32> to vector<64x8xf32>
    %8 = arith.addf %5, %7 : vector<64x8xf32>
    %c0_6 = arith.constant 0 : index
    %c0_7 = arith.constant 0 : index
    %9 = vector.load %arg7[%c0_6, %c0_7] : memref<64x8xf32, #tpu.memory_space<vmem>>, vector<64x8xf32>
    tpu.vector_store %arg7[%c0_6, %c0_7], %8 {strides = array<i32>} : memref<64x8xf32, #tpu.memory_space<vmem>>, vector<64x8xf32>,
    return
  }
  func.func @transform_0(%arg0: i32, %arg1: i32) -> (i32, i32) {
    %c0_i32 = arith.constant 0 : i32
    %c0_i32_0 = arith.constant 0 : i32
    return %arg0, %c0_i32 : i32, i32
  }
  func.func @transform_1(%arg0: i32, %arg1: i32) -> (i32, i32) {
    %c0_i32 = arith.constant 0 : i32
    %c0_i32_0 = arith.constant 0 : i32
    %c0_i32_1 = arith.constant 0 : i32
    return %c0_i32, %c0_i32_0 : i32, i32
  }
  func.func @transform_2(%arg0: i32, %arg1: i32) -> (i32, i32) {
    %c0_i32 = arith.constant 0 : i32
    %c0_i32_0 = arith.constant 0 : i32
    %c0_i32_1 = arith.constant 0 : i32
    return %c0_i32, %c0_i32_0 : i32, i32
  }
  func.func @transform_3(%arg0: i32, %arg1: i32) -> (i32, i32) {
    %c0_i32 = arith.constant 0 : i32
    %c0_i32_0 = arith.constant 0 : i32
    return %c0_i32, %arg1 : i32, i32
  }
  func.func @transform_4(%arg0: i32, %arg1: i32) -> (i32, i32) {
    %c0_i32 = arith.constant 0 : i32
    %c0_i32_0 = arith.constant 0 : i32
    return %c0_i32, %arg1 : i32, i32
  }
  func.func @transform_5(%arg0: i32, %arg1: i32) -> (i32, i32) {
    %c0_i32 = arith.constant 0 : i32
    return %arg0, %arg1 : i32, i32
  }
}

</mosaic_0001>

<llo_original>
// kernel: tpu_custom_call.1
$region0: #{tpu_custom_call.1}
  #allocation0 [shape = 'u32[]', space=smem, size = 0x4, offset = 0x4, fixed_abs, tag = 'smem constant byte address 0x4 - core index']
  #allocation1 [shape = 'u32[144,128]{1,0:T(1,128)}', space=vmem, size = 0x12000, scoped, tag = 'internal scratch']
  #allocation2 [shape = 'bf16[64,32]{1,0:T(8,128)(2,1)}', space=vmem, size = 0x4000, scoped, tag = 'scratch operand']
  %s0 = inlined_call_operand.vmem [shape: bf16[64,16], index: 0, kind: input, shape index: {}]
  %s1 = inlined_call_operand.vmem [shape: bf16[16,32], index: 1, kind: input, shape index: {}]
  %s2 = inlined_call_operand.vmem [shape: f32[1,32], index: 2, kind: input, shape index: {}]
  %s3 = inlined_call_operand.vmem [shape: bf16[32,8], index: 3, kind: input, shape index: {}]
  %s4 = inlined_call_operand.vmem [shape: f32[1,8], index: 4, kind: input, shape index: {}]
  %s5 = inlined_call_operand.vmem [shape: f32[64,8], index: 5, kind: output, shape index: {}]
  %s6 = sld [smem:[#allocation0]]
  $region34: #{tpu_custom_call.1} parent=0
    _
  %s8 = ssub.s32 1, %s6
  %s9 = scalar_select 0, %s8, %s6
  // Predicated region
  $region2: #{tpu_custom_call.1} parent=0 // pred_check
    _
  $region3: #{tpu_custom_call.1} parent=0 // pred_check_branch
    %11 = sbr.rel (0) target = $region5
  $region4: #{tpu_custom_call.1} parent=0 // pred_region
    _
  $region5: #{tpu_custom_call.1} parent=0 // pred_fallthru
    _
  // Predicated region
  $region6: #{tpu_custom_call.1} parent=0 // pred_check
    _
  $region7: #{tpu_custom_call.1} parent=0 // pred_check_branch
    %13 = sbr.rel (0) target = $region9
  $region8: #{tpu_custom_call.1} parent=0 // pred_region
    _
  $region9: #{tpu_custom_call.1} parent=0 // pred_fallthru
    _
  // Predicated region
  $region10: #{tpu_custom_call.1} parent=0 // pred_check
    _
  $region11: #{tpu_custom_call.1} parent=0 // pred_check_branch
    %15 = sbr.rel (0) target = $region13
  $region12: #{tpu_custom_call.1} parent=0 // pred_region
    _
  $region13: #{tpu_custom_call.1} parent=0 // pred_fallthru
    _
  // Predicated region
  $region14: #{tpu_custom_call.1} parent=0 // pred_check
    _
  $region15: #{tpu_custom_call.1} parent=0 // pred_check_branch
    %17 = sbr.rel (0) target = $region17
  $region16: #{tpu_custom_call.1} parent=0 // pred_region
    _
  $region17: #{tpu_custom_call.1} parent=0 // pred_fallthru
    _
  // Predicated region
  $region18: #{tpu_custom_call.1} parent=0 // pred_check
    _
  $region19: #{tpu_custom_call.1} parent=0 // pred_check_branch
    %19 = sbr.rel (0) target = $region21
  $region20: #{tpu_custom_call.1} parent=0 // pred_region
    _
  $region21: #{tpu_custom_call.1} parent=0 // pred_fallthru
    _
  %p21 = scmp.eq.s32.totalorder 0, 0
  // Predicated region
  $region22: #{tpu_custom_call.1} parent=0 // pred_check
    %p22 = pneg %p21
  $region23: #{tpu_custom_call.1} parent=0 // pred_check_branch
    %24 = sbr.rel (%p22) target = $region25
  $region24: #{tpu_custom_call.1} parent=0 // pred_region
    %v25 = vld [vmem:[%s0] sm:$0xf]
    %v26 = vld [vmem:[%s0 + $0x4] sm:$0xf]
    %v27 = vld [vmem:[%s0 + $0x8] sm:$0xf]
    %v28 = vld [vmem:[%s0 + $0xc] sm:$0xf]
    %v29 = vld [vmem:[%s0 + $0x10] sm:$0xf]
    %v30 = vld [vmem:[%s0 + $0x14] sm:$0xf]
    %v31 = vld [vmem:[%s0 + $0x18] sm:$0xf]
    %v32 = vld [vmem:[%s0 + $0x1c] sm:$0xf]
    %v33 = vld [vmem:[%s1] sm:$0xf]
    %v34 = vld [vmem:[%s1 + $0x4] sm:$0xf]
    %v35 = vld [vmem:[%s2] sm:$0x1]
    %v37 = vlaneseq
    %v38 = vshrl.u32 %v37, 7
    %v39 = vsub.s32 0, %v38
    %v40 = vrot.slane %v35, %v39
    %v50 = vunpack.c.l.b16 %v25
    %v51 = vunpack.c.l.b16 %v26
    %v52 = vunpack.c.l.b16 %v27
    %v53 = vunpack.c.l.b16 %v28
    %v54 = vunpack.c.l.b16 %v29
    %v55 = vunpack.c.l.b16 %v30
    %v56 = vunpack.c.l.b16 %v31
    %v57 = vunpack.c.l.b16 %v32
    %v58 = vpack.c.b16 %v51, %v50
    %v59 = vpack.c.b16 %v53, %v52
    %v60 = vpack.c.b16 %v55, %v54
    %v61 = vpack.c.b16 %v57, %v56
    %v64 = vunpack.c.l.b16 %v33
    %v65 = vunpack.c.l.b16 %v34
    %v66 = vpack.c.b16 %v65, %v64
    %vm68 = vcmask 130048
    %v70 = vsel %vm68, %v58, 0
    %v73 = vsel %vm68, %v59, 0
    %v76 = vsel %vm68, %v60, 0
    %v79 = vsel %vm68, %v61, 0
    %81 = vmatprep.subr.bf16.mxu0 0
    %82 = vmatpush1.bf16.msra.mxu0 0
    %83 = vmatprep.subr.bf16.mxu0 0
    %84 = vmatpush1.bf16.msra.mxu0 0
    %85 = vmatprep.subr.bf16.mxu0 0
    %86 = vmatpush1.bf16.msra.mxu0 0
    %87 = vmatprep.subr.bf16.mxu0 0
    %88 = vmatpush1.bf16.msra.mxu0 0
    %89 = vmatprep.subr.bf16.mxu0 0
    %90 = vmatpush1.bf16.msra.mxu0 0
    %91 = vmatprep.subr.bf16.mxu0 0
    %92 = vmatpush1.bf16.msra.mxu0 0
    %93 = vmatprep.subr.bf16.mxu0 0
    %94 = vmatpush1.bf16.msra.mxu0 0
    %95 = vmatprep.subr.bf16.mxu0 0
    %96 = vmatpush1.bf16.msra.mxu0 %v66
    %97 = vmatprep.subr.bf16.mxu0 0
    %98 = vmatpush2.bf16.msra.mxu0 0
    %99 = vmatprep.subr.bf16.mxu0 0
    %100 = vmatpush2.bf16.msra.mxu0 0
    %101 = vmatprep.subr.bf16.mxu0 0
    %102 = vmatpush2.bf16.msra.mxu0 0
    %103 = vmatprep.subr.bf16.mxu0 0
    %104 = vmatpush2.bf16.msra.mxu0 0
    %105 = vmatprep.subr.bf16.mxu0 0
    %106 = vmatpush2.bf16.msra.mxu0 0
    %107 = vmatprep.subr.bf16.mxu0 0
    %108 = vmatpush2.bf16.msra.mxu0 0
    %109 = vmatprep.subr.bf16.mxu0 0
    %110 = vmatpush2.bf16.msra.mxu0 0
    %111 = vmatprep.subr.bf16.mxu0 0
    %112 = vmatpush2.bf16.msra.mxu0 0
    %113 = vmatprep.mubr.bf16.mxu0 0
    %114 = vmatmul.mubr.bf16.gmra.mxu0 %v70
    %v115 = vpop.f32.mrf.mxu0
    %v116 = vadd.f32 %v40, %v115
    %v117 = vpop.f32.mrf.mxu0
    %v118 = vpop.f32.mrf.mxu0
    %v119 = vadd.f32 %v40, %v118
    %v120 = vpop.f32.mrf.mxu0
    %121 = vmatprep.mubr.bf16.mxu0 0
    %122 = vmatmul.mubr.bf16.gmra.mxu0 %v73
    %v123 = vpop.f32.mrf.mxu0
    %v124 = vadd.f32 %v40, %v123
    %v125 = vpop.f32.mrf.mxu0
    %v126 = vpop.f32.mrf.mxu0
    %v127 = vadd.f32 %v40, %v126
    %v128 = vpop.f32.mrf.mxu0
    %129 = vmatprep.mubr.bf16.mxu0 0
    %130 = vmatmul.mubr.bf16.gmra.mxu0 %v76
    %v131 = vpop.f32.mrf.mxu0
    %v132 = vadd.f32 %v40, %v131
    %v133 = vpop.f32.mrf.mxu0
    %v134 = vpop.f32.mrf.mxu0
    %v135 = vadd.f32 %v40, %v134
    %v136 = vpop.f32.mrf.mxu0
    %137 = vmatprep.mubr.bf16.mxu0 0
    %138 = vmatmul.mubr.bf16.gmra.mxu0 %v79
    %v139 = vpop.f32.mrf.mxu0
    %v140 = vadd.f32 %v40, %v139
    %v141 = vpop.f32.mrf.mxu0
    %v142 = vpop.f32.mrf.mxu0
    %v143 = vadd.f32 %v40, %v142
    %v144 = vpop.f32.mrf.mxu0
    %145 = vdwg.mxu0
    %v146 = vmax.f32 %v116, 0.0
    %v147 = vmax.f32 %v119, 0.0
    %v148 = vmax.f32 %v124, 0.0
    %v149 = vmax.f32 %v127, 0.0
    %v150 = vmax.f32 %v132, 0.0
    %v151 = vmax.f32 %v135, 0.0
    %v152 = vmax.f32 %v140, 0.0
    %v153 = vmax.f32 %v143, 0.0
    %v154 = vpack.c.bf16 %v147, %v146
    %v155 = vpack.c.bf16 %v149, %v148
    %v156 = vpack.c.bf16 %v151, %v150
    %v157 = vpack.c.bf16 %v153, %v152
    %v162 = vunpack.c.l.b16 %v154
    %v163 = vunpack.c.h.b16 %v154
    %v164 = vunpack.c.l.b16 %v155
    %v165 = vunpack.c.h.b16 %v155
    %v166 = vunpack.c.l.b16 %v156
    %v167 = vunpack.c.h.b16 %v156
    %v168 = vunpack.c.l.b16 %v157
    %v169 = vunpack.c.h.b16 %v157
    %v170 = vpack.c.b16 %v162, %v162
    %v171 = vpack.c.b16 %v163, %v163
    %v172 = vpack.c.b16 %v164, %v164
    %v173 = vpack.c.b16 %v165, %v165
    %v174 = vpack.c.b16 %v166, %v166
    %v175 = vpack.c.b16 %v167, %v167
    %v176 = vpack.c.b16 %v168, %v168
    %v177 = vpack.c.b16 %v169, %v169
    %vm186 = vcmask 257024
    %187 = vst.msk [vmem:[#allocation2] sm:$0xf] %vm186, %v170
    %188 = vst.msk [vmem:[#allocation2 + $0x4] sm:$0xf] %vm186, %v171
    %189 = vst.msk [vmem:[#allocation2 + $0x8] sm:$0xf] %vm186, %v172
    %190 = vst.msk [vmem:[#allocation2 + $0xc] sm:$0xf] %vm186, %v173
    %191 = vst.msk [vmem:[#allocation2 + $0x10] sm:$0xf] %vm186, %v174
    %192 = vst.msk [vmem:[#allocation2 + $0x14] sm:$0xf] %vm186, %v175
    %193 = vst.msk [vmem:[#allocation2 + $0x18] sm:$0xf] %vm186, %v176
    %194 = vst.msk [vmem:[#allocation2 + $0x1c] sm:$0xf] %vm186, %v177
  $region25: #{tpu_custom_call.1} parent=0 // pred_fallthru
    _
  %v195 = vld [vmem:[#allocation2] sm:$0xf]
  %v196 = vld [vmem:[#allocation2 + $0x4] sm:$0xf]
  %v197 = vld [vmem:[#allocation2 + $0x8] sm:$0xf]
  %v198 = vld [vmem:[#allocation2 + $0xc] sm:$0xf]
  %v199 = vld [vmem:[#allocation2 + $0x10] sm:$0xf]
  %v200 = vld [vmem:[#allocation2 + $0x14] sm:$0xf]
  %v201 = vld [vmem:[#allocation2 + $0x18] sm:$0xf]
  %v202 = vld [vmem:[#allocation2 + $0x1c] sm:$0xf]
  %v203 = vld [vmem:[%s3] sm:$0xf]
  %v204 = vld [vmem:[%s3 + $0x4] sm:$0xf]
  %v205 = vld [vmem:[%s3 + $0x8] sm:$0xf]
  %v206 = vld [vmem:[%s3 + $0xc] sm:$0xf]
  %v207 = vld [vmem:[%s4] sm:$0x1]
  %v209 = vlaneseq
  %v210 = vshrl.u32 %v209, 7
  %v211 = vsub.s32 0, %v210
  %v212 = vrot.slane %v207, %v211
  %v222 = vunpack.c.l.b16 %v195
  %v223 = vunpack.c.l.b16 %v196
  %v224 = vunpack.c.l.b16 %v197
  %v225 = vunpack.c.l.b16 %v198
  %v226 = vunpack.c.l.b16 %v199
  %v227 = vunpack.c.l.b16 %v200
  %v228 = vunpack.c.l.b16 %v201
  %v229 = vunpack.c.l.b16 %v202
  %v230 = vpack.c.b16 %v223, %v222
  %v231 = vpack.c.b16 %v225, %v224
  %v232 = vpack.c.b16 %v227, %v226
  %v233 = vpack.c.b16 %v229, %v228
  %v238 = vunpack.c.l.b16 %v203
  %v239 = vunpack.c.l.b16 %v204
  %v240 = vunpack.c.l.b16 %v205
  %v241 = vunpack.c.l.b16 %v206
  %v242 = vpack.c.b16 %v239, %v238
  %v243 = vpack.c.b16 %v241, %v240
  %vm246 = vcmask 261120
  %v248 = vsel %vm246, %v230, 0
  %v251 = vsel %vm246, %v231, 0
  %v254 = vsel %vm246, %v232, 0
  %v257 = vsel %vm246, %v233, 0
  %259 = vmatprep.subr.bf16.mxu0 0
  %260 = vmatpush1.bf16.msra.mxu0 0
  %261 = vmatprep.subr.bf16.mxu0 0
  %262 = vmatpush1.bf16.msra.mxu0 0
  %263 = vmatprep.subr.bf16.mxu0 0
  %264 = vmatpush1.bf16.msra.mxu0 0
  %265 = vmatprep.subr.bf16.mxu0 0
  %266 = vmatpush1.bf16.msra.mxu0 0
  %267 = vmatprep.subr.bf16.mxu0 0
  %268 = vmatpush1.bf16.msra.mxu0 0
  %269 = vmatprep.subr.bf16.mxu0 0
  %270 = vmatpush1.bf16.msra.mxu0 0
  %271 = vmatprep.subr.bf16.mxu0 0
  %272 = vmatpush1.bf16.msra.mxu0 %v243
  %273 = vmatprep.subr.bf16.mxu0 0
  %274 = vmatpush1.bf16.msra.mxu0 %v242
  %275 = vmatprep.subr.bf16.mxu0 0
  %276 = vmatpush2.bf16.msra.mxu0 0
  %277 = vmatprep.subr.bf16.mxu0 0
  %278 = vmatpush2.bf16.msra.mxu0 0
  %279 = vmatprep.subr.bf16.mxu0 0
  %280 = vmatpush2.bf16.msra.mxu0 0
  %281 = vmatprep.subr.bf16.mxu0 0
  %282 = vmatpush2.bf16.msra.mxu0 0
  %283 = vmatprep.subr.bf16.mxu0 0
  %284 = vmatpush2.bf16.msra.mxu0 0
  %285 = vmatprep.subr.bf16.mxu0 0
  %286 = vmatpush2.bf16.msra.mxu0 0
  %287 = vmatprep.subr.bf16.mxu0 0
  %288 = vmatpush2.bf16.msra.mxu0 0
  %289 = vmatprep.subr.bf16.mxu0 0
  %290 = vmatpush2.bf16.msra.mxu0 0
  %291 = vmatprep.mubr.bf16.mxu0 0
  %292 = vmatmul.mubr.bf16.gmra.mxu0 %v248
  %v293 = vpop.f32.mrf.mxu0
  %v294 = vadd.f32 %v212, %v293
  %v295 = vpop.f32.mrf.mxu0
  %v296 = vpop.f32.mrf.mxu0
  %v297 = vadd.f32 %v212, %v296
  %v298 = vpop.f32.mrf.mxu0
  %299 = vmatprep.mubr.bf16.mxu0 0
  %300 = vmatmul.mubr.bf16.gmra.mxu0 %v251
  %v301 = vpop.f32.mrf.mxu0
  %v302 = vadd.f32 %v212, %v301
  %v303 = vpop.f32.mrf.mxu0
  %v304 = vpop.f32.mrf.mxu0
  %v305 = vadd.f32 %v212, %v304
  %v306 = vpop.f32.mrf.mxu0
  %307 = vmatprep.mubr.bf16.mxu0 0
  %308 = vmatmul.mubr.bf16.gmra.mxu0 %v254
  %v309 = vpop.f32.mrf.mxu0
  %v310 = vadd.f32 %v212, %v309
  %v311 = vpop.f32.mrf.mxu0
  %v312 = vpop.f32.mrf.mxu0
  %v313 = vadd.f32 %v212, %v312
  %v314 = vpop.f32.mrf.mxu0
  %315 = vmatprep.mubr.bf16.mxu0 0
  %316 = vmatmul.mubr.bf16.gmra.mxu0 %v257
  %v317 = vpop.f32.mrf.mxu0
  %v318 = vadd.f32 %v212, %v317
  %v319 = vpop.f32.mrf.mxu0
  %v320 = vpop.f32.mrf.mxu0
  %v321 = vadd.f32 %v212, %v320
  %v322 = vpop.f32.mrf.mxu0
  %323 = vdwg.mxu0
  %vm324 = vcmask 64512
  %325 = vst.msk [vmem:[%s5] sm:$0xff] %vm324, %v294
  %326 = vst.msk [vmem:[%s5 + $0x8] sm:$0xff] %vm324, %v297
  %327 = vst.msk [vmem:[%s5 + $0x10] sm:$0xff] %vm324, %v302
  %328 = vst.msk [vmem:[%s5 + $0x18] sm:$0xff] %vm324, %v305
  %329 = vst.msk [vmem:[%s5 + $0x20] sm:$0xff] %vm324, %v310
  %330 = vst.msk [vmem:[%s5 + $0x28] sm:$0xff] %vm324, %v313
  %331 = vst.msk [vmem:[%s5 + $0x30] sm:$0xff] %vm324, %v318
  %332 = vst.msk [vmem:[%s5 + $0x38] sm:$0xff] %vm324, %v321
  // Predicated region
  $region26: #{tpu_custom_call.1} parent=0 // pred_check
    _
  $region27: #{tpu_custom_call.1} parent=0 // pred_check_branch
    %334 = sbr.rel (0) target = $region29
  $region28: #{tpu_custom_call.1} parent=0 // pred_region
    _
  $region29: #{tpu_custom_call.1} parent=0 // pred_fallthru
    _
  // Predicated region
  $region30: #{tpu_custom_call.1} parent=0 // pred_check
    _
  $region31: #{tpu_custom_call.1} parent=0 // pred_check_branch
    %336 = sbr.rel (0) target = $region33
  $region32: #{tpu_custom_call.1} parent=0 // pred_region
    _
  $region33: #{tpu_custom_call.1} parent=0 // pred_fallthru
    _

// kernel: tpu_custom_call.1
$region0: #{tpu_custom_call.1}
  #allocation0 [shape = 'u32[]', space=smem, size = 0x4, offset = 0x4, fixed_abs, tag = 'smem constant byte address 0x4 - core index']
  #allocation1 [shape = 'u32[144,128]{1,0:T(1,128)}', space=vmem, size = 0x12000, scoped, tag = 'internal scratch']
  #allocation2 [shape = 'bf16[64,32]{1,0:T(8,128)(2,1)}', space=vmem, size = 0x4000, scoped, tag = 'scratch operand']
  %s0 = inlined_call_operand.vmem [shape: bf16[64,16], index: 0, kind: input, shape index: {}]
  %s1 = inlined_call_operand.vmem [shape: bf16[16,32], index: 1, kind: input, shape index: {}]
  %s2 = inlined_call_operand.vmem [shape: f32[1,32], index: 2, kind: input, shape index: {}]
  %s3 = inlined_call_operand.vmem [shape: bf16[32,8], index: 3, kind: input, shape index: {}]
  %s4 = inlined_call_operand.vmem [shape: f32[1,8], index: 4, kind: input, shape index: {}]
  %s5 = inlined_call_operand.vmem [shape: f32[64,8], index: 5, kind: output, shape index: {}]
  %s6 = sld [smem:[#allocation0]]
  $region34: #{tpu_custom_call.1} parent=0
    _
  %s8 = ssub.s32 1, %s6
  %s9 = scalar_select 0, %s8, %s6
  // Predicated region
  $region2: #{tpu_custom_call.1} parent=0 // pred_check
    _
  $region3: #{tpu_custom_call.1} parent=0 // pred_check_branch
    %11 = sbr.rel (0) target = $region5
  $region4: #{tpu_custom_call.1} parent=0 // pred_region
    _
  $region5: #{tpu_custom_call.1} parent=0 // pred_fallthru
    _
  // Predicated region
  $region6: #{tpu_custom_call.1} parent=0 // pred_check
    _
  $region7: #{tpu_custom_call.1} parent=0 // pred_check_branch
    %13 = sbr.rel (0) target = $region9
  $region8: #{tpu_custom_call.1} parent=0 // pred_region
    _
  $region9: #{tpu_custom_call.1} parent=0 // pred_fallthru
    _
  // Predicated region
  $region10: #{tpu_custom_call.1} parent=0 // pred_check
    _
  $region11: #{tpu_custom_call.1} parent=0 // pred_check_branch
    %15 = sbr.rel (0) target = $region13
  $region12: #{tpu_custom_call.1} parent=0 // pred_region
    _
  $region13: #{tpu_custom_call.1} parent=0 // pred_fallthru
    _
  // Predicated region
  $region14: #{tpu_custom_call.1} parent=0 // pred_check
    _
  $region15: #{tpu_custom_call.1} parent=0 // pred_check_branch
    %17 = sbr.rel (0) target = $region17
  $region16: #{tpu_custom_call.1} parent=0 // pred_region
    _
  $region17: #{tpu_custom_call.1} parent=0 // pred_fallthru
    _
  // Predicated region
  $region18: #{tpu_custom_call.1} parent=0 // pred_check
    _
  $region19: #{tpu_custom_call.1} parent=0 // pred_check_branch
    %19 = sbr.rel (0) target = $region21
  $region20: #{tpu_custom_call.1} parent=0 // pred_region
    _
  $region21: #{tpu_custom_call.1} parent=0 // pred_fallthru
    _
  %p21 = scmp.eq.s32.totalorder 0, 0
  // Predicated region
  $region22: #{tpu_custom_call.1} parent=0 // pred_check
    %p22 = pneg %p21
  $region23: #{tpu_custom_call.1} parent=0 // pred_check_branch
    %24 = sbr.rel (%p22) target = $region25
  $region24: #{tpu_custom_call.1} parent=0 // pred_region
    %v25 = vld [vmem:[%s0] sm:$0xf]
    %v26 = vld [vmem:[%s0 + $0x4] sm:$0xf]
    %v27 = vld [vmem:[%s0 + $0x8] sm:$0xf]
    %v28 = vld [vmem:[%s0 + $0xc] sm:$0xf]
    %v29 = vld [vmem:[%s0 + $0x10] sm:$0xf]
    %v30 = vld [vmem:[%s0 + $0x14] sm:$0xf]
    %v31 = vld [vmem:[%s0 + $0x18] sm:$0xf]
    %v32 = vld [vmem:[%s0 + $0x1c] sm:$0xf]
    %v33 = vld [vmem:[%s1] sm:$0xf]
    %v34 = vld [vmem:[%s1 + $0x4] sm:$0xf]
    %v35 = vld [vmem:[%s2] sm:$0x1]
    %v37 = vlaneseq
    %v38 = vshrl.u32 %v37, 7
    %v39 = vsub.s32 0, %v38
    %v40 = vrot.slane %v35, %v39
    %v50 = vunpack.c.l.b16 %v25
    %v51 = vunpack.c.l.b16 %v26
    %v52 = vunpack.c.l.b16 %v27
    %v53 = vunpack.c.l.b16 %v28
    %v54 = vunpack.c.l.b16 %v29
    %v55 = vunpack.c.l.b16 %v30
    %v56 = vunpack.c.l.b16 %v31
    %v57 = vunpack.c.l.b16 %v32
    %v58 = vpack.c.b16 %v51, %v50
    %v59 = vpack.c.b16 %v53, %v52
    %v60 = vpack.c.b16 %v55, %v54
    %v61 = vpack.c.b16 %v57, %v56
    %v64 = vunpack.c.l.b16 %v33
    %v65 = vunpack.c.l.b16 %v34
    %v66 = vpack.c.b16 %v65, %v64
    %vm68 = vcmask 130048
    %v70 = vsel %vm68, %v58, 0
    %v73 = vsel %vm68, %v59, 0
    %v76 = vsel %vm68, %v60, 0
    %v79 = vsel %vm68, %v61, 0
    %81 = vmatprep.subr.bf16.mxu0 0
    %82 = vmatpush1.bf16.msra.mxu0 0
    %83 = vmatprep.subr.bf16.mxu0 0
    %84 = vmatpush1.bf16.msra.mxu0 0
    %85 = vmatprep.subr.bf16.mxu0 0
    %86 = vmatpush1.bf16.msra.mxu0 0
    %87 = vmatprep.subr.bf16.mxu0 0
    %88 = vmatpush1.bf16.msra.mxu0 0
    %89 = vmatprep.subr.bf16.mxu0 0
    %90 = vmatpush1.bf16.msra.mxu0 0
    %91 = vmatprep.subr.bf16.mxu0 0
    %92 = vmatpush1.bf16.msra.mxu0 0
    %93 = vmatprep.subr.bf16.mxu0 0
    %94 = vmatpush1.bf16.msra.mxu0 0
    %95 = vmatprep.subr.bf16.mxu0 0
    %96 = vmatpush1.bf16.msra.mxu0 %v66
    %97 = vmatprep.subr.bf16.mxu0 0
    %98 = vmatpush2.bf16.msra.mxu0 0
    %99 = vmatprep.subr.bf16.mxu0 0
    %100 = vmatpush2.bf16.msra.mxu0 0
    %101 = vmatprep.subr.bf16.mxu0 0
    %102 = vmatpush2.bf16.msra.mxu0 0
    %103 = vmatprep.subr.bf16.mxu0 0
    %104 = vmatpush2.bf16.msra.mxu0 0
    %105 = vmatprep.subr.bf16.mxu0 0
    %106 = vmatpush2.bf16.msra.mxu0 0
    %107 = vmatprep.subr.bf16.mxu0 0
    %108 = vmatpush2.bf16.msra.mxu0 0
    %109 = vmatprep.subr.bf16.mxu0 0
    %110 = vmatpush2.bf16.msra.mxu0 0
    %111 = vmatprep.subr.bf16.mxu0 0
    %112 = vmatpush2.bf16.msra.mxu0 0
    %113 = vmatprep.mubr.bf16.mxu0 0
    %114 = vmatmul.mubr.bf16.gmra.mxu0 %v70
    %v115 = vpop.f32.mrf.mxu0
    %v116 = vadd.f32 %v40, %v115
    %v117 = vpop.f32.mrf.mxu0
    %v118 = vpop.f32.mrf.mxu0
    %v119 = vadd.f32 %v40, %v118
    %v120 = vpop.f32.mrf.mxu0
    %121 = vmatprep.mubr.bf16.mxu0 0
    %122 = vmatmul.mubr.bf16.gmra.mxu0 %v73
    %v123 = vpop.f32.mrf.mxu0
    %v124 = vadd.f32 %v40, %v123
    %v125 = vpop.f32.mrf.mxu0
    %v126 = vpop.f32.mrf.mxu0
    %v127 = vadd.f32 %v40, %v126
    %v128 = vpop.f32.mrf.mxu0
    %129 = vmatprep.mubr.bf16.mxu0 0
    %130 = vmatmul.mubr.bf16.gmra.mxu0 %v76
    %v131 = vpop.f32.mrf.mxu0
    %v132 = vadd.f32 %v40, %v131
    %v133 = vpop.f32.mrf.mxu0
    %v134 = vpop.f32.mrf.mxu0
    %v135 = vadd.f32 %v40, %v134
    %v136 = vpop.f32.mrf.mxu0
    %137 = vmatprep.mubr.bf16.mxu0 0
    %138 = vmatmul.mubr.bf16.gmra.mxu0 %v79
    %v139 = vpop.f32.mrf.mxu0
    %v140 = vadd.f32 %v40, %v139
    %v141 = vpop.f32.mrf.mxu0
    %v142 = vpop.f32.mrf.mxu0
    %v143 = vadd.f32 %v40, %v142
    %v144 = vpop.f32.mrf.mxu0
    %145 = vdwg.mxu0
    %v146 = vmax.f32 %v116, 0.0
    %v147 = vmax.f32 %v119, 0.0
    %v148 = vmax.f32 %v124, 0.0
    %v149 = vmax.f32 %v127, 0.0
    %v150 = vmax.f32 %v132, 0.0
    %v151 = vmax.f32 %v135, 0.0
    %v152 = vmax.f32 %v140, 0.0
    %v153 = vmax.f32 %v143, 0.0
    %v154 = vpack.c.bf16 %v147, %v146
    %v155 = vpack.c.bf16 %v149, %v148
    %v156 = vpack.c.bf16 %v151, %v150
    %v157 = vpack.c.bf16 %v153, %v152
    %v162 = vunpack.c.l.b16 %v154
    %v163 = vunpack.c.h.b16 %v154
    %v164 = vunpack.c.l.b16 %v155
    %v165 = vunpack.c.h.b16 %v155
    %v166 = vunpack.c.l.b16 %v156
    %v167 = vunpack.c.h.b16 %v156
    %v168 = vunpack.c.l.b16 %v157
    %v169 = vunpack.c.h.b16 %v157
    %v170 = vpack.c.b16 %v162, %v162
    %v171 = vpack.c.b16 %v163, %v163
    %v172 = vpack.c.b16 %v164, %v164
    %v173 = vpack.c.b16 %v165, %v165
    %v174 = vpack.c.b16 %v166, %v166
    %v175 = vpack.c.b16 %v167, %v167
    %v176 = vpack.c.b16 %v168, %v168
    %v177 = vpack.c.b16 %v169, %v169
    %vm186 = vcmask 257024
    %187 = vst.msk [vmem:[#allocation2] sm:$0xf] %vm186, %v170
    %188 = vst.msk [vmem:[#allocation2 + $0x4] sm:$0xf] %vm186, %v171
    %189 = vst.msk [vmem:[#allocation2 + $0x8] sm:$0xf] %vm186, %v172
    %190 = vst.msk [vmem:[#allocation2 + $0xc] sm:$0xf] %vm186, %v173
    %191 = vst.msk [vmem:[#allocation2 + $0x10] sm:$0xf] %vm186, %v174
    %192 = vst.msk [vmem:[#allocation2 + $0x14] sm:$0xf] %vm186, %v175
    %193 = vst.msk [vmem:[#allocation2 + $0x18] sm:$0xf] %vm186, %v176
    %194 = vst.msk [vmem:[#allocation2 + $0x1c] sm:$0xf] %vm186, %v177
  $region25: #{tpu_custom_call.1} parent=0 // pred_fallthru
    _
  %v195 = vld [vmem:[#allocation2] sm:$0xf]
  %v196 = vld [vmem:[#allocation2 + $0x4] sm:$0xf]
  %v197 = vld [vmem:[#allocation2 + $0x8] sm:$0xf]
  %v198 = vld [vmem:[#allocation2 + $0xc] sm:$0xf]
  %v199 = vld [vmem:[#allocation2 + $0x10] sm:$0xf]
  %v200 = vld [vmem:[#allocation2 + $0x14] sm:$0xf]
  %v201 = vld [vmem:[#allocation2 + $0x18] sm:$0xf]
  %v202 = vld [vmem:[#allocation2 + $0x1c] sm:$0xf]
  %v203 = vld [vmem:[%s3] sm:$0xf]
  %v204 = vld [vmem:[%s3 + $0x4] sm:$0xf]
  %v205 = vld [vmem:[%s3 + $0x8] sm:$0xf]
  %v206 = vld [vmem:[%s3 + $0xc] sm:$0xf]
  %v207 = vld [vmem:[%s4] sm:$0x1]
  %v209 = vlaneseq
  %v210 = vshrl.u32 %v209, 7
  %v211 = vsub.s32 0, %v210
  %v212 = vrot.slane %v207, %v211
  %v222 = vunpack.c.l.b16 %v195
  %v223 = vunpack.c.l.b16 %v196
  %v224 = vunpack.c.l.b16 %v197
  %v225 = vunpack.c.l.b16 %v198
  %v226 = vunpack.c.l.b16 %v199
  %v227 = vunpack.c.l.b16 %v200
  %v228 = vunpack.c.l.b16 %v201
  %v229 = vunpack.c.l.b16 %v202
  %v230 = vpack.c.b16 %v223, %v222
  %v231 = vpack.c.b16 %v225, %v224
  %v232 = vpack.c.b16 %v227, %v226
  %v233 = vpack.c.b16 %v229, %v228
  %v238 = vunpack.c.l.b16 %v203
  %v239 = vunpack.c.l.b16 %v204
  %v240 = vunpack.c.l.b16 %v205
  %v241 = vunpack.c.l.b16 %v206
  %v242 = vpack.c.b16 %v239, %v238
  %v243 = vpack.c.b16 %v241, %v240
  %vm246 = vcmask 261120
  %v248 = vsel %vm246, %v230, 0
  %v251 = vsel %vm246, %v231, 0
  %v254 = vsel %vm246, %v232, 0
  %v257 = vsel %vm246, %v233, 0
  %259 = vmatprep.subr.bf16.mxu0 0
  %260 = vmatpush1.bf16.msra.mxu0 0
  %261 = vmatprep.subr.bf16.mxu0 0
  %262 = vmatpush1.bf16.msra.mxu0 0
  %263 = vmatprep.subr.bf16.mxu0 0
  %264 = vmatpush1.bf16.msra.mxu0 0
  %265 = vmatprep.subr.bf16.mxu0 0
  %266 = vmatpush1.bf16.msra.mxu0 0
  %267 = vmatprep.subr.bf16.mxu0 0
  %268 = vmatpush1.bf16.msra.mxu0 0
  %269 = vmatprep.subr.bf16.mxu0 0
  %270 = vmatpush1.bf16.msra.mxu0 0
  %271 = vmatprep.subr.bf16.mxu0 0
  %272 = vmatpush1.bf16.msra.mxu0 %v243
  %273 = vmatprep.subr.bf16.mxu0 0
  %274 = vmatpush1.bf16.msra.mxu0 %v242
  %275 = vmatprep.subr.bf16.mxu0 0
  %276 = vmatpush2.bf16.msra.mxu0 0
  %277 = vmatprep.subr.bf16.mxu0 0
  %278 = vmatpush2.bf16.msra.mxu0 0
  %279 = vmatprep.subr.bf16.mxu0 0
  %280 = vmatpush2.bf16.msra.mxu0 0
  %281 = vmatprep.subr.bf16.mxu0 0
  %282 = vmatpush2.bf16.msra.mxu0 0
  %283 = vmatprep.subr.bf16.mxu0 0
  %284 = vmatpush2.bf16.msra.mxu0 0
  %285 = vmatprep.subr.bf16.mxu0 0
  %286 = vmatpush2.bf16.msra.mxu0 0
  %287 = vmatprep.subr.bf16.mxu0 0
  %288 = vmatpush2.bf16.msra.mxu0 0
  %289 = vmatprep.subr.bf16.mxu0 0
  %290 = vmatpush2.bf16.msra.mxu0 0
  %291 = vmatprep.mubr.bf16.mxu0 0
  %292 = vmatmul.mubr.bf16.gmra.mxu0 %v248
  %v293 = vpop.f32.mrf.mxu0
  %v294 = vadd.f32 %v212, %v293
  %v295 = vpop.f32.mrf.mxu0
  %v296 = vpop.f32.mrf.mxu0
  %v297 = vadd.f32 %v212, %v296
  %v298 = vpop.f32.mrf.mxu0
  %299 = vmatprep.mubr.bf16.mxu0 0
  %300 = vmatmul.mubr.bf16.gmra.mxu0 %v251
  %v301 = vpop.f32.mrf.mxu0
  %v302 = vadd.f32 %v212, %v301
  %v303 = vpop.f32.mrf.mxu0
  %v304 = vpop.f32.mrf.mxu0
  %v305 = vadd.f32 %v212, %v304
  %v306 = vpop.f32.mrf.mxu0
  %307 = vmatprep.mubr.bf16.mxu0 0
  %308 = vmatmul.mubr.bf16.gmra.mxu0 %v254
  %v309 = vpop.f32.mrf.mxu0
  %v310 = vadd.f32 %v212, %v309
  %v311 = vpop.f32.mrf.mxu0
  %v312 = vpop.f32.mrf.mxu0
  %v313 = vadd.f32 %v212, %v312
  %v314 = vpop.f32.mrf.mxu0
  %315 = vmatprep.mubr.bf16.mxu0 0
  %316 = vmatmul.mubr.bf16.gmra.mxu0 %v257
  %v317 = vpop.f32.mrf.mxu0
  %v318 = vadd.f32 %v212, %v317
  %v319 = vpop.f32.mrf.mxu0
  %v320 = vpop.f32.mrf.mxu0
  %v321 = vadd.f32 %v212, %v320
  %v322 = vpop.f32.mrf.mxu0
  %323 = vdwg.mxu0
  %vm324 = vcmask 64512
  %325 = vst.msk [vmem:[%s5] sm:$0xff] %vm324, %v294
  %326 = vst.msk [vmem:[%s5 + $0x8] sm:$0xff] %vm324, %v297
  %327 = vst.msk [vmem:[%s5 + $0x10] sm:$0xff] %vm324, %v302
  %328 = vst.msk [vmem:[%s5 + $0x18] sm:$0xff] %vm324, %v305
  %329 = vst.msk [vmem:[%s5 + $0x20] sm:$0xff] %vm324, %v310
  %330 = vst.msk [vmem:[%s5 + $0x28] sm:$0xff] %vm324, %v313
  %331 = vst.msk [vmem:[%s5 + $0x30] sm:$0xff] %vm324, %v318
  %332 = vst.msk [vmem:[%s5 + $0x38] sm:$0xff] %vm324, %v321
  // Predicated region
  $region26: #{tpu_custom_call.1} parent=0 // pred_check
    _
  $region27: #{tpu_custom_call.1} parent=0 // pred_check_branch
    %334 = sbr.rel (0) target = $region29
  $region28: #{tpu_custom_call.1} parent=0 // pred_region
    _
  $region29: #{tpu_custom_call.1} parent=0 // pred_fallthru
    _
  // Predicated region
  $region30: #{tpu_custom_call.1} parent=0 // pred_check
    _
  $region31: #{tpu_custom_call.1} parent=0 // pred_check_branch
    %336 = sbr.rel (0) target = $region33
  $region32: #{tpu_custom_call.1} parent=0 // pred_region
    _
  $region33: #{tpu_custom_call.1} parent=0 // pred_fallthru
    _

</llo_original>
